<compile_context>
chip_gen: v7x
topology: tpu7x:2x2x1
jax: 0.10.0
libtpu: 0.0.40
codegen_flags: <defaults>
</compile_context>

<pallas_src>
import functools

import jax
import jax.numpy as jnp
from jax import lax
from jax.experimental import pallas as pl
from jax.experimental.pallas import tpu as pltpu


def _ls_ce_kernel(x_ref, t_ref, o_ref, acc_ref, *, smoothing, n_total, nb_per_split):
    """One batch tile of label-smoothing cross entropy.

    x_ref:   (TILE_N, C) logits (input dtype; f32 only where needed)
    t_ref:   (TILE_N, 1) int32 class indices
    o_ref:   (1, 8, 128) f32 per-split output block; [0,0,0] = partial sum, rest zeros
    acc_ref: (TILE_N, 1) f32 running per-row loss accumulator (VMEM scratch)
    """
    s = pl.program_id(0)          # parallel split (TensorCore on v7x)
    i = pl.program_id(1)          # reduction step within the split

    @pl.when(i == 0)
    def _():
        acc_ref[...] = jnp.zeros_like(acc_ref)

    x_nat = x_ref[...]                              # (TILE_N, C) input dtype
    x = x_nat.astype(jnp.float32)                   # f32 for max / exp / lse
    t = t_ref[...]                                  # (TILE_N, 1) int32
    tn, c = x.shape

    # Numerically stable logsumexp pieces; log_softmax itself is never materialized:
    #   per_row = (m + lse) - sum(x * w, -1)
    #   with w = confidence + smoothing/C at the target column, smoothing/C elsewhere,
    # which equals conf*nll + smoothing*smooth_loss of the reference.
    m = jnp.max(x, axis=-1, keepdims=True)                              # (TILE_N, 1)
    lse = jnp.log(jnp.sum(jnp.exp(x - m), axis=-1, keepdims=True))      # (TILE_N, 1)

    # (1, C) iota broadcast against (TILE_N, 1) targets -> (TILE_N, C) one-hot mask.
    col_ids = lax.broadcasted_iota(jnp.int32, (1, c), 1)
    is_tgt = col_ids == t

    confidence = 1.0 - smoothing
    if x_nat.dtype == jnp.float32:
        xw, wdt = x, jnp.float32
    else:
        # bf16 (etc.) select/multiply on v6e/v7x VPU lanes; f32 accumulation below.
        xw, wdt = x_nat, x_nat.dtype
    hi = jnp.asarray(confidence + smoothing / c, dtype=wdt)
    lo = jnp.asarray(smoothing / c, dtype=wdt)
    wsum = jnp.sum((xw * jnp.where(is_tgt, hi, lo)).astype(jnp.float32),
                   axis=-1, keepdims=True)                              # (TILE_N, 1) f32

    per_row = (m + lse) - wsum                                          # (TILE_N, 1)

    # Mask rows that are padding: either the ragged tail of the last real block or a
    # fully duplicated (clamped) block of an over-provisioned split. The select discards
    # any Inf/NaN computed on garbage rows before it reaches the accumulator.
    row0 = (s * nb_per_split + i) * tn
    row_ids = lax.broadcasted_iota(jnp.int32, (tn, 1), 0) + row0
    per_row = jnp.where(row_ids < n_total, per_row, 0.0)

    acc_ref[...] = acc_ref[...] + per_row

    @pl.when(i == pl.num_programs(1) - 1)
    def _():
        psum = jnp.sum(acc_ref[...])                                    # one reduce / split
        sub = lax.broadcasted_iota(jnp.int32, o_ref.shape, 1)
        lane = lax.broadcasted_iota(jnp.int32, o_ref.shape, 2)
        o_ref[...] = jnp.where((sub == 0) & (lane == 0), psum, 0.0)


def _tile_budget_bytes():
    """Per-generation input-tile byte budget (keeps double-buffered DMA + f32
    intermediates comfortably inside scoped VMEM on each chip)."""
    try:
        kind = jax.devices()[0].device_kind.lower()
    except Exception:
        kind = ""
    if "v5" in kind:          # v5e: 16 MiB default scoped VMEM -> smaller tiles
        return 2 * 1024 * 1024
    return 4 * 1024 * 1024    # v6e / v7x


def _choose_tile_n(n, c, itemsize, budget_bytes):
    """Pick a batch tile: as many rows as the byte budget allows (cap 8192)."""
    rows = budget_bytes // max(1, c * itemsize)
    rows = max(8, min(8192, (rows // 8) * 8))     # multiple of 8 (sublane constraint)
    if n <= rows:
        return n                                   # single full-extent block is always legal
    return rows


def label_smoothing_cross_entropy(x, target, smoothing=0.1, tile_n=None, n_split=None):
    """Pallas TPU implementation of timm's LabelSmoothingCrossEntropy.forward."""
    assert smoothing < 1.0
    n, c = x.shape
    itemsize = int(jnp.dtype(x.dtype).itemsize)
    if tile_n is None:
        tile_n = _choose_tile_n(n, c, itemsize, _tile_budget_bytes())
    num_blocks = pl.cdiv(n, tile_n)

    # Split the reduction across (up to) 2 TensorCores: ~2x on v7x, negligible elsewhere.
    if n_split is None:
        n_split = 2
    n_split = max(1, min(n_split, num_blocks))
    nb_per_split = pl.cdiv(num_blocks, n_split)
    last_block = num_blocks - 1

    t2 = target.astype(jnp.int32).reshape(n, 1)

    def in_map(s, i):
        # Clamp so the DMA never goes past the last real block; duplicated blocks are
        # fully masked out inside the kernel via their logical row index.
        return (jnp.minimum(s * nb_per_split + i, last_block), 0)

    in_tile_bytes = tile_n * c * itemsize
    f32_tile_bytes = tile_n * c * 4
    vmem_limit = 2 * in_tile_bytes + 6 * f32_tile_bytes + (4 << 20)
    vmem_limit = int(max(16 << 20, min(64 << 20, vmem_limit)))

    cost = pl.CostEstimate(
        flops=6 * n * c,
        transcendentals=n * c,
        bytes_accessed=n * c * itemsize + n * 4 + n_split * 8 * 128 * 4,
    )

    out = pl.pallas_call(
        functools.partial(_ls_ce_kernel, smoothing=float(smoothing), n_total=n,
                          nb_per_split=nb_per_split),
        out_shape=jax.ShapeDtypeStruct((n_split, 8, 128), jnp.float32),
        grid=(n_split, nb_per_split),
        in_specs=[
            pl.BlockSpec((tile_n, c), in_map),     # logits tile
            pl.BlockSpec((tile_n, 1), in_map),     # target tile (pipelines with x)
        ],
        out_specs=pl.BlockSpec((1, 8, 128), lambda s, i: (s, 0, 0)),
        scratch_shapes=[pltpu.VMEM((tile_n, 1), jnp.float32)],
        compiler_params=pltpu.CompilerParams(
            dimension_semantics=("parallel", "arbitrary"),
            vmem_limit_bytes=vmem_limit,
        ),
        cost_estimate=cost,
    )(x, t2)

    # Every per-split block is zeros except its [0,0] partial sum -> sum everything.
    return jnp.sum(out) / jnp.float32(n)


def _reference(x, target, smoothing=0.1):
    logprobs = jax.nn.log_softmax(x.astype(jnp.float32), axis=-1)
    nll = -jnp.take_along_axis(logprobs, target[:, None].astype(jnp.int32), axis=-1)[:, 0]
    smooth = -jnp.mean(logprobs, axis=-1)
    loss = (1.0 - smoothing) * nll + smoothing * smooth
    return jnp.mean(loss)


if __name__ == "__main__":
    key = jax.random.PRNGKey(0)
    kx, kt, kx2, kt2 = jax.random.split(key, 4)

    # Case 1: small, single block (batch=8, classes=32) -> n_split collapses to 1.
    N, C = 8, 32
    x = jax.random.normal(kx, (N, C), dtype=jnp.float32)
    target = jax.random.randint(kt, (N,), 0, C, dtype=jnp.int32)

    loss = jax.block_until_ready(label_smoothing_cross_entropy(x, target, smoothing=0.1))
    ref = jax.block_until_ready(_reference(x, target, smoothing=0.1))
    assert jnp.allclose(loss, ref, atol=1e-5, rtol=1e-5), (loss, ref)

    # Case 2: multi-block grid with a ragged last tile AND the 2-way split (grid (2,2),
    # one clamped duplicate block): N=20 rows, forced TILE_N=8.
    N2, C2 = 20, 32
    x2 = jax.random.normal(kx2, (N2, C2), dtype=jnp.float32)
    target2 = jax.random.randint(kt2, (N2,), 0, C2, dtype=jnp.int32)

    loss2 = jax.block_until_ready(
        label_smoothing_cross_entropy(x2, target2, smoothing=0.1, tile_n=8))
    ref2 = jax.block_until_ready(_reference(x2, target2, smoothing=0.1))
    assert jnp.allclose(loss2, ref2, atol=1e-5, rtol=1e-5), (loss2, ref2)

    print("KERNEL_OK")
</pallas_src>

<mosaic_0001>
module attributes {stable_mosaic.version = 11 : i64} {
  func.func @_ls_ce_kernel(%arg0: i32, %arg1: i32, %arg2: memref<8x32xf32, #tpu.memory_space<vmem>>, %arg3: memref<8x1xi32, #tpu.memory_space<vmem>>, %arg4: memref<1x8x128xf32, #tpu.memory_space<vmem>>, %arg5: memref<8x1xf32, #tpu.memory_space<vmem>>) attributes {dimension_semantics = [#tpu.dimension_semantics<parallel>, #tpu.dimension_semantics<arbitrary>], iteration_bounds = array<i64: 1, 1>, scalar_prefetch = 0 : i64, scratch_operands = 1 : i64, tpu.core_type = #tpu.core_type<tc>, window_params = [{transform_indices = @transform_0, window_bounds = array<i64: 8, 32>}, {transform_indices = @transform_1, window_bounds = array<i64: 8, 1>}, {transform_indices = @transform_2, window_bounds = array<i64: 1, 8, 128>}]} {
    %c0_i32 = arith.constant 0 : i32
    %0 = arith.cmpi eq, %arg1, %c0_i32 : i32
    %1 = arith.extui %0 : i1 to i32
    %c0_i32_0 = arith.constant 0 : i32
    %2 = arith.cmpi ne, %1, %c0_i32_0 : i32
    scf.if %2 {
      %cst_16 = arith.constant 0.000000e+00 : f32
      %41 = vector.broadcast %cst_16 : f32 to vector<8x1xf32>
      %c0_17 = arith.constant 0 : index
      %c0_18 = arith.constant 0 : index
      %42 = vector.load %arg5[%c0_17, %c0_18] : memref<8x1xf32, #tpu.memory_space<vmem>>, vector<8x1xf32>
      tpu.vector_store %arg5[%c0_17, %c0_18], %41 {strides = array<i32>} : memref<8x1xf32, #tpu.memory_space<vmem>>, vector<8x1xf32>,
    } else {
    }
    %c0 = arith.constant 0 : index
    %c0_1 = arith.constant 0 : index
    %3 = vector.load %arg2[%c0, %c0_1] : memref<8x32xf32, #tpu.memory_space<vmem>>, vector<8x32xf32>
    %c0_2 = arith.constant 0 : index
    %c0_3 = arith.constant 0 : index
    %4 = vector.load %arg3[%c0_2, %c0_3] : memref<8x1xi32, #tpu.memory_space<vmem>>, vector<8x1xi32>
    %cst = arith.constant dense<0xFF800000> : vector<8xf32>
    %5 = vector.multi_reduction <maximumf>, %3, %cst [1] : vector<8x32xf32> to vector<8xf32>
    %6 = vector.shape_cast %5 : vector<8xf32> to vector<8x1xf32>
    %7 = vector.broadcast %6 : vector<8x1xf32> to vector<8x32xf32>
    %8 = arith.subf %3, %7 : vector<8x32xf32>
    %9 = math.exp %8 : vector<8x32xf32>
    %cst_4 = arith.constant dense<0.000000e+00> : vector<8xf32>
    %10 = vector.multi_reduction <add>, %9, %cst_4 [1] : vector<8x32xf32> to vector<8xf32>
    %11 = vector.shape_cast %10 : vector<8xf32> to vector<8x1xf32>
    %12 = math.log %11 : vector<8x1xf32>
    %13 = tpu.iota {dimensions = array<i32: 1>} : vector<1x32xi32>
    %14 = vector.broadcast %13 : vector<1x32xi32> to vector<8x32xi32>
    %15 = vector.broadcast %4 : vector<8x1xi32> to vector<8x32xi32>
    %16 = arith.cmpi eq, %14, %15 : vector<8x32xi32>
    %cst_5 = arith.constant 0.903124988 : f32
    %cst_6 = arith.constant 3.125000e-03 : f32
    %17 = vector.broadcast %cst_5 : f32 to vector<8x32xf32>
    %18 = vector.broadcast %cst_6 : f32 to vector<8x32xf32>
    %19 = arith.select %16, %17, %18 : vector<8x32xi1>, vector<8x32xf32>
    %20 = arith.mulf %3, %19 : vector<8x32xf32>
    %cst_7 = arith.constant dense<0.000000e+00> : vector<8xf32>
    %21 = vector.multi_reduction <add>, %20, %cst_7 [1] : vector<8x32xf32> to vector<8xf32>
    %22 = vector.shape_cast %21 : vector<8xf32> to vector<8x1xf32>
    %23 = arith.addf %6, %12 : vector<8x1xf32>
    %24 = arith.subf %23, %22 : vector<8x1xf32>
    %c1_i32 = arith.constant 1 : i32
    %25 = arith.muli %arg0, %c1_i32 : i32
    %26 = arith.addi %25, %arg1 : i32
    %c8_i32 = arith.constant 8 : i32
    %27 = arith.muli %26, %c8_i32 : i32
    %28 = tpu.iota {dimensions = array<i32: 0>} : vector<8x1xi32>
    %29 = vector.broadcast %27 : i32 to vector<8x1xi32>
    %30 = arith.addi %28, %29 : vector<8x1xi32>
    %c8_i32_8 = arith.constant 8 : i32
    %31 = vector.broadcast %c8_i32_8 : i32 to vector<8x1xi32>
    %32 = arith.cmpi slt, %30, %31 : vector<8x1xi32>
    %cst_9 = arith.constant 0.000000e+00 : f32
    %33 = vector.broadcast %cst_9 : f32 to vector<8x1xf32>
    %34 = arith.select %32, %24, %33 : vector<8x1xi1>, vector<8x1xf32>
    %c0_10 = arith.constant 0 : index
    %c0_11 = arith.constant 0 : index
    %35 = vector.load %arg5[%c0_10, %c0_11] : memref<8x1xf32, #tpu.memory_space<vmem>>, vector<8x1xf32>
    %36 = arith.addf %35, %34 : vector<8x1xf32>
    %c0_12 = arith.constant 0 : index
    %c0_13 = arith.constant 0 : index
    %37 = vector.load %arg5[%c0_12, %c0_13] : memref<8x1xf32, #tpu.memory_space<vmem>>, vector<8x1xf32>
    tpu.vector_store %arg5[%c0_12, %c0_13], %36 {strides = array<i32>} : memref<8x1xf32, #tpu.memory_space<vmem>>, vector<8x1xf32>,
    %c0_i32_14 = arith.constant 0 : i32
    %38 = arith.cmpi eq, %arg1, %c0_i32_14 : i32
    %39 = arith.extui %38 : i1 to i32
    %c0_i32_15 = arith.constant 0 : i32
    %40 = arith.cmpi ne, %39, %c0_i32_15 : i32
    scf.if %40 {
      %c0_16 = arith.constant 0 : index
      %c0_17 = arith.constant 0 : index
      %41 = vector.load %arg5[%c0_16, %c0_17] : memref<8x1xf32, #tpu.memory_space<vmem>>, vector<8x1xf32>
      %42 = vector.shape_cast %41 : vector<8x1xf32> to vector<1x8x1xf32>
      %cst_18 = arith.constant dense<0.000000e+00> : vector<1xf32>
      %43 = vector.multi_reduction <add>, %42, %cst_18 [1, 2] : vector<1x8x1xf32> to vector<1xf32>
      %44 = vector.shape_cast %43 : vector<1xf32> to vector<1x1x1xf32>
      %45 = vector.extract %44[0, 0, 0] : f32 from vector<1x1x1xf32>
      %46 = tpu.iota {dimensions = array<i32: 1>} : vector<1x8x128xi32>
      %47 = tpu.iota {dimensions = array<i32: 2>} : vector<1x8x128xi32>
      %c0_i32_19 = arith.constant 0 : i32
      %48 = vector.broadcast %c0_i32_19 : i32 to vector<1x8x128xi32>
      %49 = arith.cmpi eq, %46, %48 : vector<1x8x128xi32>
      %c0_i32_20 = arith.constant 0 : i32
      %50 = vector.broadcast %c0_i32_20 : i32 to vector<1x8x128xi32>
      %51 = arith.cmpi eq, %47, %50 : vector<1x8x128xi32>
      %52 = arith.andi %49, %51 : vector<1x8x128xi1>
      %cst_21 = arith.constant 0.000000e+00 : f32
      %53 = vector.broadcast %45 : f32 to vector<1x8x128xf32>
      %54 = vector.broadcast %cst_21 : f32 to vector<1x8x128xf32>
      %55 = arith.select %52, %53, %54 : vector<1x8x128xi1>, vector<1x8x128xf32>
      %c0_22 = arith.constant 0 : index
      %c0_23 = arith.constant 0 : index
      %c0_24 = arith.constant 0 : index
      %56 = vector.load %arg4[%c0_22, %c0_23, %c0_24] : memref<1x8x128xf32, #tpu.memory_space<vmem>>, vector<1x8x128xf32>
      tpu.vector_store %arg4[%c0_22, %c0_23, %c0_24], %55 {strides = array<i32>} : memref<1x8x128xf32, #tpu.memory_space<vmem>>, vector<1x8x128xf32>,
    } else {
    }
    return
  }
  func.func @transform_0(%arg0: i32, %arg1: i32) -> (i32, i32) {
    %c1_i32 = arith.constant 1 : i32
    %0 = arith.muli %arg0, %c1_i32 : i32
    %1 = arith.addi %0, %arg1 : i32
    %c0_i32 = arith.constant 0 : i32
    %2 = arith.minsi %1, %c0_i32 : i32
    %c0_i32_0 = arith.constant 0 : i32
    %c0_i32_1 = arith.constant 0 : i32
    return %2, %c0_i32_0 : i32, i32
  }
  func.func @transform_1(%arg0: i32, %arg1: i32) -> (i32, i32) {
    %c1_i32 = arith.constant 1 : i32
    %0 = arith.muli %arg0, %c1_i32 : i32
    %1 = arith.addi %0, %arg1 : i32
    %c0_i32 = arith.constant 0 : i32
    %2 = arith.minsi %1, %c0_i32 : i32
    %c0_i32_0 = arith.constant 0 : i32
    %c0_i32_1 = arith.constant 0 : i32
    return %2, %c0_i32_0 : i32, i32
  }
  func.func @transform_2(%arg0: i32, %arg1: i32) -> (i32, i32, i32) {
    %c0_i32 = arith.constant 0 : i32
    %c0_i32_0 = arith.constant 0 : i32
    %c0_i32_1 = arith.constant 0 : i32
    return %arg0, %c0_i32, %c0_i32_0 : i32, i32, i32
  }
}

</mosaic_0001>

<llo_original>
// kernel: tpu_custom_call.1
$region0: #{tpu_custom_call.1}
  #allocation0 [shape = 'u32[]', space=smem, size = 0x4, offset = 0x4, fixed_abs, tag = 'smem constant byte address 0x4 - core index']
  #allocation1 [shape = 'u32[144,128]{1,0:T(1,128)}', space=vmem, size = 0x12000, scoped, tag = 'internal scratch']
  #allocation2 [shape = 'f32[8,1]{1,0:T(8,128)}', space=vmem, size = 0x1000, scoped, tag = 'scratch operand']
  %s0 = inlined_call_operand.vmem [shape: f32[8,32], index: 0, kind: input, shape index: {}]
  %s1 = inlined_call_operand.vmem [shape: s32[8,1], index: 1, kind: input, shape index: {}]
  %s2 = inlined_call_operand.hbm [shape: f32[1,8,128], index: 2, kind: output, shape index: {}]
  %s3 = sld [smem:[#allocation0]]
  $region26: #{tpu_custom_call.1} parent=0
    _
  %s5 = ssub.s32 1, %s3
  %s6 = scalar_select 0, %s5, %s3
  $region1: #{tpu_custom_call.1} parent=0
    #allocation3 [shape = 'u8[4096]{0}', space=vmem, size = 0x1000, scoped, tag = 'output window, operand 0, single buffered']
    #allocation4 [shape = 's32[1]{0}', space=sflag, size = 0x4, scoped, tag = 'scoped memory for tpu_custom_call.1']
    %7 = vsyncpa [#allocation4], 0
    // Predicated region
    $region2: #{tpu_custom_call.1} parent=1 // pred_check
      _
    $region3: #{tpu_custom_call.1} parent=1 // pred_check_branch
      %9 = sbr.rel (0) target = $region5
    $region4: #{tpu_custom_call.1} parent=1 // pred_region
      %s10 = sadd.s32 0, 0
      %p11 = scmp.lt.s32.totalorder %s10, 0
      %s12 = scalar_select %p11, %s10, 0
      %p13 = scmp.lt.s32.totalorder %s12, 0
      %s14 = scalar_select %p13, %s12, 0
      %s15 = smul.addr %s14, 8
      %s16 = scalar_lea.vmem %s0, %s15
      %s17 = sadd.s32 0, 0
      %p18 = scmp.lt.s32.totalorder %s17, 0
      %s19 = scalar_select %p18, %s17, 0
    $region5: #{tpu_custom_call.1} parent=1 // pred_fallthru
      _
    // Predicated region
    $region6: #{tpu_custom_call.1} parent=1 // pred_check
      _
    $region7: #{tpu_custom_call.1} parent=1 // pred_check_branch
      %21 = sbr.rel (0) target = $region9
    $region8: #{tpu_custom_call.1} parent=1 // pred_region
      %s22 = sadd.s32 0, 0
      %p23 = scmp.lt.s32.totalorder %s22, 0
      %s24 = scalar_select %p23, %s22, 0
      %p25 = scmp.lt.s32.totalorder %s24, 0
      %s26 = scalar_select %p25, %s24, 0
      %s27 = smul.addr %s26, 8
      %s28 = scalar_lea.vmem %s1, %s27
      %s29 = sadd.s32 0, 0
      %p30 = scmp.lt.s32.totalorder %s29, 0
      %s31 = scalar_select %p30, %s29, 0
    $region9: #{tpu_custom_call.1} parent=1 // pred_fallthru
      _
    %s32 = sadd.s32 0, 0
    %p33 = scmp.lt.s32.totalorder %s32, 0
    %s34 = scalar_select %p33, %s32, 0
    %p35 = scmp.lt.s32.totalorder %s34, 0
    %s36 = scalar_select %p35, %s34, 0
    %s37 = smul.addr %s36, 8
    %s38 = scalar_lea.vmem %s0, %s37
    %s39 = sadd.s32 0, 0
    %p40 = scmp.lt.s32.totalorder %s39, 0
    %s41 = scalar_select %p40, %s39, 0
    %p42 = scmp.lt.s32.totalorder %s41, 0
    %s43 = scalar_select %p42, %s41, 0
    %s44 = smul.addr %s43, 8
    %s45 = scalar_lea.vmem %s1, %s44
    %s46 = sadd.s32 0, 0
    %p47 = scmp.lt.s32.totalorder %s46, 0
    %s48 = scalar_select %p47, %s46, 0
    %p49 = scmp.lt.s32.totalorder %s48, 0
    %s50 = scalar_select %p49, %s48, 0
    %s51 = smul.addr %s50, 8
    %s52 = scalar_lea.vmem %s0, %s51
    %s53 = sadd.s32 0, 0
    %p54 = scmp.lt.s32.totalorder %s53, 0
    %s55 = scalar_select %p54, %s53, 0
    %s56 = sadd.s32 0, 0
    %p57 = scmp.lt.s32.totalorder %s56, 0
    %s58 = scalar_select %p57, %s56, 0
    %p59 = scmp.lt.s32.totalorder %s58, 0
    %s60 = scalar_select %p59, %s58, 0
    %s61 = smul.addr %s60, 8
    %s62 = scalar_lea.vmem %s1, %s61
    %s63 = sadd.s32 0, 0
    %p64 = scmp.lt.s32.totalorder %s63, 0
    %s65 = scalar_select %p64, %s63, 0
    %p66 = scmp.eq.s32.totalorder 0, 0
    // Predicated region
    $region10: #{tpu_custom_call.1} parent=1 // pred_check
      %p67 = pneg %p66
    $region11: #{tpu_custom_call.1} parent=1 // pred_check_branch
      %69 = sbr.rel (%p67) target = $region13
    $region12: #{tpu_custom_call.1} parent=1 // pred_region
      %vm70 = vcmask 7168
      %71 = vst.msk [vmem:[#allocation2] sm:$0xff] %vm70, 0.0
    $region13: #{tpu_custom_call.1} parent=1 // pred_fallthru
      _
    %v72 = vld [vmem:[%s52] sm:$0xff]
    %v73 = vld [vmem:[%s62] sm:$0xff]
    %vm74 = vcmask 261120
    %v75 = vsel %vm74, %v72, -inf
    %76 = vmax.xlane.f32.xlu0 %v75
    %v77 = vpop.xlane.xlu0 %76
    %v78 = vsub.f32 %v72, %v77
    %v79 = vmul.f32 %v78, 1.442695
    %v80 = vpow.pop %v79
    %v81 = vsel %vm74, %v80, 0.0
    %82 = vadd.xlane.f32.xlu0 %v81
    %v83 = vpop.xlane.xlu0 %82
    %v84 = vlog2.pop %v83
    %v85 = vmul.f32 %v84, 0.6931472
    %v86 = vlaneseq
    %v87 = vand.u32 %v86, 127
    %88 = vset.pattern.permute.xlu0 0
    %89 = vperm.xlu0 %88, %v73
    %v90 = vpop.permute.xlu0 %89
    %vm91 = vcmp.eq.s32.totalorder %v87, %v90
    %v92 = vsel %vm91, 0.903125, 0.003125
    %v93 = vmul.f32 %v72, %v92
    %v94 = vsel %vm74, %v93, 0.0
    %95 = vadd.xlane.f32.xlu0 %v94
    %v96 = vpop.xlane.xlu0 %95
    %v97 = vadd.f32 %v77, %v85
    %v98 = vsub.f32 %v97, %v96
    %s99 = sadd.s32 0, 0
    %s100 = smul.u32 %s99, 8
    %v101 = vlaneseq
    %v102 = vshrl.u32 %v101, 7
    %v103 = vstv %s100
    %v104 = vadd.s32 %v102, %v103
    %vm105 = vcmp.lt.s32.totalorder %v104, 8
    %v106 = vsel %vm105, %v98, 0.0
    %v107 = vld [vmem:[#allocation2] sm:$0xff]
    %v108 = vadd.f32 %v107, %v106
    %vm109 = vcmask 7168
    %110 = vst.msk [vmem:[#allocation2] sm:$0xff] %vm109, %v108
    // Predicated region
    $region14: #{tpu_custom_call.1} parent=1 // pred_check
      %p111 = pneg %p66
    $region15: #{tpu_custom_call.1} parent=1 // pred_check_branch
      %113 = sbr.rel (%p111) target = $region17
    $region16: #{tpu_custom_call.1} parent=1 // pred_region
      %v114 = vld [vmem:[#allocation2] sm:$0xff]
      %v115 = vsel %vm109, %v114, 0.0
      %116 = vadd.xlane.f32.xlu0 %v115
      %v117 = vpop.xlane.xlu0 %116
      %v118 = vrot.slane %v117, 4
      %v119 = vadd.f32 %v117, %v118
      %v120 = vrot.slane %v119, 2
      %v121 = vadd.f32 %v119, %v120
      %v122 = vrot.slane %v121, 1
      %v123 = vadd.f32 %v121, %v122
      %s124 = vtos %v123
      %vm125 = vcmp.eq.s32.totalorder %v102, 0
      %vm126 = vcmp.eq.s32.totalorder %v87, 0
      %vm127 = vmand %vm125, %vm126
      %v128 = vstv %s124
      %v129 = vsel %vm127, %v128, 0.0
      %130 = vst [vmem:[#allocation3] sm:$0xff] %v129
    $region17: #{tpu_custom_call.1} parent=1 // pred_fallthru
      _
    // Predicated region
    $region18: #{tpu_custom_call.1} parent=1 // pred_check
      _
    $region19: #{tpu_custom_call.1} parent=1 // pred_check_branch
      %132 = sbr.rel (0) target = $region21
    $region20: #{tpu_custom_call.1} parent=1 // pred_region
      %s134 = ssub.s32 128, 128
      %135 = vsyncadd [#allocation4], %s134
      %s137 = sshll.u32 [#allocation3], 4
      %s138 = int_to_ptr.vmem [resolvable:$true] %s137
      %140 = dma.vmem_to_hbm [thread:$0]  %s138, 128, %s2, [#allocation4]
    $region21: #{tpu_custom_call.1} parent=1 // pred_fallthru
      _
    // Predicated region
    $region22: #{tpu_custom_call.1} parent=1 // pred_check
      _
    $region23: #{tpu_custom_call.1} parent=1 // pred_check_branch
      %142 = sbr.rel (0) target = $region25
    $region24: #{tpu_custom_call.1} parent=1 // pred_region
      %143 = dma.done [#allocation4], 128
    $region25: #{tpu_custom_call.1} parent=1 // pred_fallthru
      _
    %144 = vsyncpa [#allocation4], 1

</llo_original>
